<compile_context>
chip_gen: v5e
topology: v5e:2x2
jax: 0.10.0
libtpu: 0.0.40
codegen_flags: <defaults>
</compile_context>

<pallas_src>
import functools

import jax
import jax.numpy as jnp
from jax import lax
from jax.experimental import pallas as pl
from jax.experimental.pallas import tpu as pltpu


def _group_esn_kernel(prex_ref, whh_hbm_ref, out_ref, h_ref, w_ref, sem_ref):
    # prex_ref:    (TT, N)  f32   precomputed x_t @ W_ih^T (groups concatenated, padded)
    # whh_hbm_ref: (N, N)   bf16  block-diagonal recurrent weights, left in HBM (pl.ANY)
    # out_ref:     (TT, N)  f32   lane-dense output block (one row per time step)
    # h_ref:       (1, N)   f32   VMEM scratch: hidden state carried across grid steps
    # w_ref:       (N, N)   bf16  VMEM scratch: resident single-buffered recurrent weights
    # sem_ref:     DMA semaphore for the one-time weight copy
    tb = pl.program_id(0)

    @pl.when(tb == 0)
    def _init():
        cp = pltpu.make_async_copy(whh_hbm_ref, w_ref, sem_ref)
        cp.start()                           # overlap the one-time weight DMA ...
        h_ref[...] = jnp.zeros_like(h_ref)   # ... with the hidden-state zero-init
        cp.wait()

    tt = out_ref.shape[0]                    # static, always a multiple of 8

    def block8(b, h):
        # One sublane-aligned block of 8 recurrence steps (bounded unroll = 8).
        base = pl.multiple_of(b * 8, 8)
        px = prex_ref[pl.ds(base, 8), :]     # one unmasked (8, N) load
        w = w_ref[...]                       # live range bounded to this sub-block
        rows = []
        for j in range(8):
            # pre = x_t @ W_ih^T (precomputed) + h @ W_hh_blockdiag  -> (1, N), f32 acc
            pre = px[j:j + 1, :] + jnp.dot(h.astype(jnp.bfloat16), w,
                                           preferred_element_type=jnp.float32)
            h = jnp.tanh(pre)                # activation / state carry stay f32
            rows.append(h)
        # One unmasked, sublane-aligned (8, N) store instead of 8 masked row stores.
        out_ref[pl.ds(base, 8), :] = jnp.concatenate(rows, axis=0)
        return h

    h_ref[...] = lax.fori_loop(0, tt // 8, block8, h_ref[...])


@functools.partial(jax.jit, static_argnames=("include_input", "time_block"))
def group_of_esn_cell_forward(x, w_ih, w_hh, include_input=False, time_block=256):
    """x: (T, I); w_ih: (G, H, I); w_hh: (G, H, H)  ->  (T, G*H [+ I])."""
    T, I = x.shape
    G, H, _ = w_ih.shape
    N = G * H

    x = x.astype(jnp.float32)
    w_ih = w_ih.astype(jnp.float32)
    w_hh = w_hh.astype(jnp.float32)

    # (1) Hoisted input projection: one dense MXU-friendly matmul for ALL time steps.
    #     pre_x[t, g*H + j] = sum_i x[t, i] * w_ih[g, j, i]   (group-major, hidden-minor)
    pre_x = x @ w_ih.reshape(N, I).T                      # (T, G*H), f32

    # (2) Pack per-group recurrent weights, pre-transposed, into one block-diagonal matrix
    #     so that  h_row @ W_bd == concat_g( h_g @ W_hh_g^T ).
    w_hh_t = jnp.transpose(w_hh, (0, 2, 1))               # (G, H_in, H_out) == W_hh_g^T
    w_bd = jnp.zeros((N, N), jnp.float32)
    for g in range(G):
        w_bd = w_bd.at[g * H:(g + 1) * H, g * H:(g + 1) * H].set(w_hh_t[g])

    # (3) Pad: lane dim to a multiple of 128, time to a multiple of TT (TT multiple of 8).
    N_pad = ((N + 127) // 128) * 128
    TT = max(8, ((min(time_block, T) + 7) // 8) * 8)
    T_pad = ((T + TT - 1) // TT) * TT
    pre_x = jnp.pad(pre_x, ((0, T_pad - T), (0, N_pad - N)))
    w_bd = jnp.pad(w_bd, ((0, N_pad - N), (0, N_pad - N)))

    # (4) bf16 weight storage for the MXU operand; h/tanh/accumulation stay f32.
    w_bd = w_bd.astype(jnp.bfloat16)

    # Explicit VMEM budget: bf16 single-buffered weights + f32 double-buffered in/out
    # blocks + h scratch + slack.  (On v7x keep this comfortably under 64 MiB.)
    vmem_limit = int(2 * N_pad * N_pad + 16 * TT * N_pad + 4 * N_pad + (4 << 20))

    out = pl.pallas_call(
        _group_esn_kernel,
        out_shape=jax.ShapeDtypeStruct((T_pad, N_pad), jnp.float32),
        grid_spec=pltpu.PrefetchScalarGridSpec(
            num_scalar_prefetch=0,
            grid=(T_pad // TT,),
            in_specs=[
                pl.BlockSpec((TT, N_pad), lambda tb: (tb, 0)),   # pre_x time block
                pl.BlockSpec(memory_space=pl.ANY),               # weights stay in HBM
            ],
            out_specs=pl.BlockSpec((TT, N_pad), lambda tb: (tb, 0)),
            scratch_shapes=[
                pltpu.VMEM((1, N_pad), jnp.float32),             # carried hidden state
                pltpu.VMEM((N_pad, N_pad), jnp.bfloat16),        # resident weights (1x)
                pltpu.SemaphoreType.DMA(()),
            ],
        ),
        compiler_params=pltpu.CompilerParams(
            dimension_semantics=("arbitrary",),    # time recurrence must stay sequential
            vmem_limit_bytes=vmem_limit,
        ),
    )(pre_x, w_bd)

    out = out[:T, :N]
    if include_input:
        out = jnp.concatenate([out, x.reshape(T, -1)], axis=1)
    return out


def reference_forward(x, w_ih, w_hh, include_input=False):
    """Pure-JAX (f32) mirror of GroupOfESNCell.forward (batch=1 per step, tanh cells)."""
    T, I = x.shape
    G, H, _ = w_ih.shape
    hs = [jnp.zeros((1, H), jnp.float32) for _ in range(G)]
    rows = []
    for t in range(T):
        xt = x[t:t + 1]                                    # (1, I)
        new_states = []
        for g in range(G):
            pre = xt @ w_ih[g].T + hs[g] @ w_hh[g].T       # (1, H)
            hs[g] = jnp.tanh(pre)
            new_states.append(hs[g])
        rows.append(jnp.concatenate(new_states, axis=1)[0])
    out = jnp.stack(rows)
    if include_input:
        out = jnp.concatenate([out, x], axis=1)
    return out


if __name__ == "__main__":
    T, I, H, G = 20, 16, 32, 4   # seq len, input_size, hidden_size, num groups

    key = jax.random.PRNGKey(0)
    kx, kih, khh = jax.random.split(key, 3)
    x = jax.random.normal(kx, (T, I), dtype=jnp.float32)
    # Deterministic synthetic reservoir weights (shapes match ESNCellBase.init_parameters).
    w_ih = jax.random.uniform(kih, (G, H, I), dtype=jnp.float32, minval=-0.5, maxval=0.5)
    w_hh = jax.random.uniform(khh, (G, H, H), dtype=jnp.float32, minval=-0.5, maxval=0.5)
    w_hh = w_hh * (0.9 / jnp.sqrt(jnp.float32(H)))   # keep the recurrence contractive

    ok = True
    # Default time_block=256 -> single grid step, multiple 8-step sub-blocks inside.
    for include_input in (False, True):
        got = jax.block_until_ready(
            group_of_esn_cell_forward(x, w_ih, w_hh, include_input=include_input))
        want = reference_forward(x, w_ih, w_hh, include_input=include_input)
        assert got.shape == want.shape, (got.shape, want.shape)
        # bf16 MXU weights -> loosened tolerance vs the pure-f32 reference.
        ok &= bool(jnp.allclose(got, want, rtol=2e-2, atol=2e-2))

    # Small explicit time_block -> multiple grid steps, exercises the carried h state.
    got = jax.block_until_ready(
        group_of_esn_cell_forward(x, w_ih, w_hh, include_input=False, time_block=8))
    want = reference_forward(x, w_ih, w_hh, include_input=False)
    ok &= bool(jnp.allclose(got, want, rtol=2e-2, atol=2e-2))

    if ok:
        print("KERNEL_OK")
    else:
        print("MISMATCH")
</pallas_src>

<mosaic_0001>
module attributes {stable_mosaic.version = 11 : i64} {
  func.func @_group_esn_kernel(%arg0: i32, %arg1: memref<24x128xf32, #tpu.memory_space<vmem>>, %arg2: memref<128x128xbf16, #tpu.memory_space<any>>, %arg3: memref<24x128xf32, #tpu.memory_space<vmem>>, %arg4: memref<1x128xf32, #tpu.memory_space<vmem>>, %arg5: memref<128x128xbf16, #tpu.memory_space<vmem>>, %arg6: memref<!tpu.dma_semaphore, #tpu.memory_space<semaphore_mem>>) attributes {dimension_semantics = [#tpu.dimension_semantics<arbitrary>], iteration_bounds = array<i64: 1>, scalar_prefetch = 0 : i64, scratch_operands = 3 : i64, tpu.core_type = #tpu.core_type<tc>, window_params = [{transform_indices = @transform_0, window_bounds = array<i64: 24, 128>}, {}, {transform_indices = @transform_2, window_bounds = array<i64: 24, 128>}]} {
    %c0_i32 = arith.constant 0 : i32
    %0 = arith.cmpi eq, %arg0, %c0_i32 : i32
    %1 = arith.extui %0 : i1 to i32
    %c0_i32_0 = arith.constant 0 : i32
    %2 = arith.cmpi ne, %1, %c0_i32_0 : i32
    scf.if %2 {
      tpu.enqueue_dma source(%arg2 : memref<128x128xbf16, #tpu.memory_space<any>>) target(%arg5 : memref<128x128xbf16, #tpu.memory_space<vmem>>) target_semaphore(%arg6 : memref<!tpu.dma_semaphore, #tpu.memory_space<semaphore_mem>>)
      %cst = arith.constant 0.000000e+00 : f32
      %7 = vector.broadcast %cst : f32 to vector<1x128xf32>
      %c0_6 = arith.constant 0 : index
      %c0_7 = arith.constant 0 : index
      %8 = vector.load %arg4[%c0_6, %c0_7] : memref<1x128xf32, #tpu.memory_space<vmem>>, vector<1x128xf32>
      tpu.vector_store %arg4[%c0_6, %c0_7], %7 {strides = array<i32>} : memref<1x128xf32, #tpu.memory_space<vmem>>, vector<1x128xf32>,
      tpu.wait_dma2 semaphore(%arg6 : memref<!tpu.dma_semaphore, #tpu.memory_space<semaphore_mem>>) src(%arg2 : memref<128x128xbf16, #tpu.memory_space<any>>) dst(%arg5 : memref<128x128xbf16, #tpu.memory_space<vmem>>)
    } else {
    }
    %c0 = arith.constant 0 : index
    %c0_1 = arith.constant 0 : index
    %3 = vector.load %arg4[%c0, %c0_1] : memref<1x128xf32, #tpu.memory_space<vmem>>, vector<1x128xf32>
    %c0_i32_2 = arith.constant 0 : i32
    %c3_i32 = arith.constant 3 : i32
    %4 = arith.addi %c0_i32_2, %c3_i32 : i32
    %c1_i32 = arith.constant 1 : i32
    %5 = scf.for %arg7 = %c0_i32_2 to %4 step %c1_i32 iter_args(%arg8 = %3) -> (vector<1x128xf32>)  : i32 {
      %c8_i32 = arith.constant 8 : i32
      %7 = arith.muli %arg7, %c8_i32 : i32
      %8 = tpu.assume_multiple %7, 8 : i32
      %9 = arith.index_cast %8 : i32 to index
      %c0_6 = arith.constant 0 : index
      %10 = vector.load %arg1[%9, %c0_6] : memref<24x128xf32, #tpu.memory_space<vmem>>, vector<8x128xf32>
      %c0_7 = arith.constant 0 : index
      %c0_8 = arith.constant 0 : index
      %11 = vector.load %arg5[%c0_7, %c0_8] : memref<128x128xbf16, #tpu.memory_space<vmem>>, vector<128x128xbf16>
      %12 = vector.extract_strided_slice %10 {offsets = [0, 0], sizes = [1, 128], strides = [1, 1]} : vector<8x128xf32> to vector<1x128xf32>
      %13 = arith.truncf %arg8 : vector<1x128xf32> to vector<1x128xbf16>
      %cst = arith.constant dense<0.000000e+00> : vector<1x128xf32>
      %14 = tpu.matmul %13, %11, %cst {dimension_numbers = #tpu.dot_dimension_numbers<[1], [0], [0], [1], [0, 0, 1, 1], [], []>} : vector<1x128xbf16>, vector<128x128xbf16>, vector<1x128xf32> -> vector<1x128xf32>
      %15 = arith.addf %12, %14 : vector<1x128xf32>
      %16 = math.tanh %15 : vector<1x128xf32>
      %17 = vector.extract_strided_slice %10 {offsets = [1, 0], sizes = [1, 128], strides = [1, 1]} : vector<8x128xf32> to vector<1x128xf32>
      %18 = arith.truncf %16 : vector<1x128xf32> to vector<1x128xbf16>
      %cst_9 = arith.constant dense<0.000000e+00> : vector<1x128xf32>
      %19 = tpu.matmul %18, %11, %cst_9 {dimension_numbers = #tpu.dot_dimension_numbers<[1], [0], [0], [1], [0, 0, 1, 1], [], []>} : vector<1x128xbf16>, vector<128x128xbf16>, vector<1x128xf32> -> vector<1x128xf32>
      %20 = arith.addf %17, %19 : vector<1x128xf32>
      %21 = math.tanh %20 : vector<1x128xf32>
      %22 = vector.extract_strided_slice %10 {offsets = [2, 0], sizes = [1, 128], strides = [1, 1]} : vector<8x128xf32> to vector<1x128xf32>
      %23 = arith.truncf %21 : vector<1x128xf32> to vector<1x128xbf16>
      %cst_10 = arith.constant dense<0.000000e+00> : vector<1x128xf32>
      %24 = tpu.matmul %23, %11, %cst_10 {dimension_numbers = #tpu.dot_dimension_numbers<[1], [0], [0], [1], [0, 0, 1, 1], [], []>} : vector<1x128xbf16>, vector<128x128xbf16>, vector<1x128xf32> -> vector<1x128xf32>
      %25 = arith.addf %22, %24 : vector<1x128xf32>
      %26 = math.tanh %25 : vector<1x128xf32>
      %27 = vector.extract_strided_slice %10 {offsets = [3, 0], sizes = [1, 128], strides = [1, 1]} : vector<8x128xf32> to vector<1x128xf32>
      %28 = arith.truncf %26 : vector<1x128xf32> to vector<1x128xbf16>
      %cst_11 = arith.constant dense<0.000000e+00> : vector<1x128xf32>
      %29 = tpu.matmul %28, %11, %cst_11 {dimension_numbers = #tpu.dot_dimension_numbers<[1], [0], [0], [1], [0, 0, 1, 1], [], []>} : vector<1x128xbf16>, vector<128x128xbf16>, vector<1x128xf32> -> vector<1x128xf32>
      %30 = arith.addf %27, %29 : vector<1x128xf32>
      %31 = math.tanh %30 : vector<1x128xf32>
      %32 = vector.extract_strided_slice %10 {offsets = [4, 0], sizes = [1, 128], strides = [1, 1]} : vector<8x128xf32> to vector<1x128xf32>
      %33 = arith.truncf %31 : vector<1x128xf32> to vector<1x128xbf16>
      %cst_12 = arith.constant dense<0.000000e+00> : vector<1x128xf32>
      %34 = tpu.matmul %33, %11, %cst_12 {dimension_numbers = #tpu.dot_dimension_numbers<[1], [0], [0], [1], [0, 0, 1, 1], [], []>} : vector<1x128xbf16>, vector<128x128xbf16>, vector<1x128xf32> -> vector<1x128xf32>
      %35 = arith.addf %32, %34 : vector<1x128xf32>
      %36 = math.tanh %35 : vector<1x128xf32>
      %37 = vector.extract_strided_slice %10 {offsets = [5, 0], sizes = [1, 128], strides = [1, 1]} : vector<8x128xf32> to vector<1x128xf32>
      %38 = arith.truncf %36 : vector<1x128xf32> to vector<1x128xbf16>
      %cst_13 = arith.constant dense<0.000000e+00> : vector<1x128xf32>
      %39 = tpu.matmul %38, %11, %cst_13 {dimension_numbers = #tpu.dot_dimension_numbers<[1], [0], [0], [1], [0, 0, 1, 1], [], []>} : vector<1x128xbf16>, vector<128x128xbf16>, vector<1x128xf32> -> vector<1x128xf32>
      %40 = arith.addf %37, %39 : vector<1x128xf32>
      %41 = math.tanh %40 : vector<1x128xf32>
      %42 = vector.extract_strided_slice %10 {offsets = [6, 0], sizes = [1, 128], strides = [1, 1]} : vector<8x128xf32> to vector<1x128xf32>
      %43 = arith.truncf %41 : vector<1x128xf32> to vector<1x128xbf16>
      %cst_14 = arith.constant dense<0.000000e+00> : vector<1x128xf32>
      %44 = tpu.matmul %43, %11, %cst_14 {dimension_numbers = #tpu.dot_dimension_numbers<[1], [0], [0], [1], [0, 0, 1, 1], [], []>} : vector<1x128xbf16>, vector<128x128xbf16>, vector<1x128xf32> -> vector<1x128xf32>
      %45 = arith.addf %42, %44 : vector<1x128xf32>
      %46 = math.tanh %45 : vector<1x128xf32>
      %47 = vector.extract_strided_slice %10 {offsets = [7, 0], sizes = [1, 128], strides = [1, 1]} : vector<8x128xf32> to vector<1x128xf32>
      %48 = arith.truncf %46 : vector<1x128xf32> to vector<1x128xbf16>
      %cst_15 = arith.constant dense<0.000000e+00> : vector<1x128xf32>
      %49 = tpu.matmul %48, %11, %cst_15 {dimension_numbers = #tpu.dot_dimension_numbers<[1], [0], [0], [1], [0, 0, 1, 1], [], []>} : vector<1x128xbf16>, vector<128x128xbf16>, vector<1x128xf32> -> vector<1x128xf32>
      %50 = arith.addf %47, %49 : vector<1x128xf32>
      %51 = math.tanh %50 : vector<1x128xf32>
      %52 = tpu.concatenate %16, %21, %26, %31, %36, %41, %46, %51 in 0 : vector<1x128xf32>, vector<1x128xf32>, vector<1x128xf32>, vector<1x128xf32>, vector<1x128xf32>, vector<1x128xf32>, vector<1x128xf32>, vector<1x128xf32> -> vector<8x128xf32>
      %53 = arith.index_cast %8 : i32 to index
      %c0_16 = arith.constant 0 : index
      %54 = vector.load %arg3[%53, %c0_16] : memref<24x128xf32, #tpu.memory_space<vmem>>, vector<8x128xf32>
      tpu.vector_store %arg3[%53, %c0_16], %52 {strides = array<i32>} : memref<24x128xf32, #tpu.memory_space<vmem>>, vector<8x128xf32>,
      scf.yield %51 : vector<1x128xf32>
    }
    %c3_i32_3 = arith.constant 3 : i32
    %c0_4 = arith.constant 0 : index
    %c0_5 = arith.constant 0 : index
    %6 = vector.load %arg4[%c0_4, %c0_5] : memref<1x128xf32, #tpu.memory_space<vmem>>, vector<1x128xf32>
    tpu.vector_store %arg4[%c0_4, %c0_5], %5 {strides = array<i32>} : memref<1x128xf32, #tpu.memory_space<vmem>>, vector<1x128xf32>,
    return
  }
  func.func @transform_0(%arg0: i32) -> (i32, i32) {
    %c0_i32 = arith.constant 0 : i32
    %c0_i32_0 = arith.constant 0 : i32
    return %arg0, %c0_i32 : i32, i32
  }
  func.func @transform_2(%arg0: i32) -> (i32, i32) {
    %c0_i32 = arith.constant 0 : i32
    %c0_i32_0 = arith.constant 0 : i32
    return %arg0, %c0_i32 : i32, i32
  }
}

</mosaic_0001>

<llo_original>
// kernel: group_of_esn_cell_forward.1
$region0: #{group_of_esn_cell_forward.1}
  #allocation0 [shape = 'u32[]', space=smem, size = 0x4, offset = 0x4, fixed_abs, tag = 'smem constant byte address 0x4 - core index']
  #allocation1 [shape = 'u32[72,128]{1,0:T(1,128)}', space=vmem, size = 0x9000, scoped, tag = 'internal scratch']
  #allocation2 [shape = 'f32[1,128]{1,0:T(1,128)}', space=vmem, size = 0x200, scoped, tag = 'scratch operand']
  #allocation3 [shape = 'bf16[128,128]{1,0:T(8,128)(2,1)}', space=vmem, size = 0x8000, scoped, tag = 'scratch operand']
  #allocation4 [shape = 's32[1]{0}', space=sflag, size = 0x4, scoped, tag = 'scratch operand']
  #allocation7 [shape = 's32[]', space=sflag, size = 0x4, offset = 0, fixed_abs, tag = 'sflag constant byte address 0x0 - dummy sync flag']
  %s0 = inlined_call_operand.vmem [shape: f32[24,128], index: 0, kind: input, shape index: {}]
  %s1 = inlined_call_operand.vmem [shape: bf16[128,128], index: 1, kind: input, shape index: {}]
  %s2 = inlined_call_operand.hbm [shape: f32[24,128], index: 2, kind: output, shape index: {}]
  %s3 = sld [smem:[#allocation0]]
  $region44: #{group_of_esn_cell_forward.1} parent=0
    _
  %s5 = ssub.s32 1, %s3
  %s6 = scalar_select 0, %s5, %s3
  $region1: #{group_of_esn_cell_forward.1} parent=0
    #allocation5 [shape = 'u8[12288]{0}', space=vmem, size = 0x3000, scoped, tag = 'output window, operand 0, single buffered']
    #allocation6 [shape = 's32[1]{0}', space=sflag, size = 0x4, scoped, tag = 'scoped memory for group_of_esn_cell_forward.1']
    %7 = vsyncpa [#allocation6], 0
    // Predicated region
    $region2: #{group_of_esn_cell_forward.1} parent=1 // pred_check
      _
    $region3: #{group_of_esn_cell_forward.1} parent=1 // pred_check_branch
      %9 = sbr.rel (0) target = $region5
    $region4: #{group_of_esn_cell_forward.1} parent=1 // pred_region
      _
    $region5: #{group_of_esn_cell_forward.1} parent=1 // pred_fallthru
      _
    %p10 = scmp.eq.s32.totalorder 0, 0
    // Predicated region
    $region6: #{group_of_esn_cell_forward.1} parent=1 // pred_check
      %p11 = pneg %p10
    $region7: #{group_of_esn_cell_forward.1} parent=1 // pred_check_branch
      %13 = sbr.rel (%p11) target = $region9
    $region8: #{group_of_esn_cell_forward.1} parent=1 // pred_region
      // Predicated region
      $region10: #{group_of_esn_cell_forward.1} parent=8 // pred_check
        _
      $region11: #{group_of_esn_cell_forward.1} parent=8 // pred_check_branch
        %15 = sbr.rel (0) target = $region13
      $region12: #{group_of_esn_cell_forward.1} parent=8 // pred_region
        loop: start=0, step=1, limit=1
        $region14: #{group_of_esn_cell_forward.1} parent=12 // loop_pre_header
          _
        $region15: #{group_of_esn_cell_forward.1} parent=12 // loop_header
          %s17 = sphi 0, %s21
          %p18 = scmp.ge.s32.totalorder %s17, 1
          %s22 = sphi %s1, %s1
          %s23 = sphi [#allocation3], [#allocation3]
        $region16: #{group_of_esn_cell_forward.1} parent=12 // loop_header_branch
          %20 = sbr.rel (%p18) target = $region20
        $region17: #{group_of_esn_cell_forward.1} parent=12 // loop_body
          %v24 = vld [vmem:[%s22] sm:$0xff]
          %25 = vst [vmem:[%s23] sm:$0xff] %v24
          %v26 = vld [vmem:[%s22 + $0x8] sm:$0xff]
          %27 = vst [vmem:[%s23 + $0x8] sm:$0xff] %v26
          %v28 = vld [vmem:[%s22 + $0x10] sm:$0xff]
          %29 = vst [vmem:[%s23 + $0x10] sm:$0xff] %v28
          %v30 = vld [vmem:[%s22 + $0x18] sm:$0xff]
          %31 = vst [vmem:[%s23 + $0x18] sm:$0xff] %v30
          %v32 = vld [vmem:[%s22 + $0x20] sm:$0xff]
          %33 = vst [vmem:[%s23 + $0x20] sm:$0xff] %v32
          %v34 = vld [vmem:[%s22 + $0x28] sm:$0xff]
          %35 = vst [vmem:[%s23 + $0x28] sm:$0xff] %v34
          %v36 = vld [vmem:[%s22 + $0x30] sm:$0xff]
          %37 = vst [vmem:[%s23 + $0x30] sm:$0xff] %v36
          %v38 = vld [vmem:[%s22 + $0x38] sm:$0xff]
          %39 = vst [vmem:[%s23 + $0x38] sm:$0xff] %v38
        $region18: #{group_of_esn_cell_forward.1} parent=12 // loop_footer
          %s21 = sadd.s32 1, %s17
        $region19: #{group_of_esn_cell_forward.1} parent=12 // loop_footer_branch
          %16 = sbr.rel target = $region15
        $region20: #{group_of_esn_cell_forward.1} parent=12 // loop_exit
          _
      $region13: #{group_of_esn_cell_forward.1} parent=8 // pred_fallthru
        _
      // Predicated region
      $region21: #{group_of_esn_cell_forward.1} parent=8 // pred_check
        _
      $region22: #{group_of_esn_cell_forward.1} parent=8 // pred_check_branch
        %41 = sbr.rel target = $region24
      $region23: #{group_of_esn_cell_forward.1} parent=8 // pred_region
        _
      $region24: #{group_of_esn_cell_forward.1} parent=8 // pred_fallthru
        _
      // Predicated region
      $region25: #{group_of_esn_cell_forward.1} parent=8 // pred_check
        _
      $region26: #{group_of_esn_cell_forward.1} parent=8 // pred_check_branch
        %44 = sbr.rel (0) target = $region28
      $region27: #{group_of_esn_cell_forward.1} parent=8 // pred_region
        %45 = vsyncadd [#allocation4], 1024
      $region28: #{group_of_esn_cell_forward.1} parent=8 // pred_fallthru
        _
      %46 = vst [vmem:[#allocation2] sm:$0x1] 0.0
      %s47 = smul.u32 4, 16
      %s48 = smul.u32 %s47, 1
      %s49 = sshll.u32 %s48, 4
      %50 = dma.done [#allocation4], %s49
    $region9: #{group_of_esn_cell_forward.1} parent=1 // pred_fallthru
      _
    %v51 = vld [vmem:[#allocation2] sm:$0x1]
    loop: start=0, step=1, limit=3
    $region29: #{group_of_esn_cell_forward.1} parent=1 // loop_pre_header
      _
    $region30: #{group_of_esn_cell_forward.1} parent=1 // loop_header
      %s53 = sphi 0, %s57
      %p54 = scmp.ge.s32.totalorder %s53, 3
      %v58 = vphi %v51, %v315
    $region31: #{group_of_esn_cell_forward.1} parent=1 // loop_header_branch
      %56 = sbr.rel (%p54) target = $region35
    $region32: #{group_of_esn_cell_forward.1} parent=1 // loop_body
      %s59 = smul.u32 %s53, 8
      %s60 = scalar_lea.vmem %s0, %s59
      %v61 = vld [vmem:[%s60] sm:$0xff]
      %v62 = vld [vmem:[#allocation3] sm:$0xf]
      %v63 = vld [vmem:[#allocation3 + $0x4] sm:$0xf]
      %v64 = vld [vmem:[#allocation3 + $0x8] sm:$0xf]
      %v65 = vld [vmem:[#allocation3 + $0xc] sm:$0xf]
      %v66 = vld [vmem:[#allocation3 + $0x10] sm:$0xf]
      %v67 = vld [vmem:[#allocation3 + $0x14] sm:$0xf]
      %v68 = vld [vmem:[#allocation3 + $0x18] sm:$0xf]
      %v69 = vld [vmem:[#allocation3 + $0x1c] sm:$0xf]
      %v70 = vld [vmem:[#allocation3 + $0x20] sm:$0xf]
      %v71 = vld [vmem:[#allocation3 + $0x24] sm:$0xf]
      %v72 = vld [vmem:[#allocation3 + $0x28] sm:$0xf]
      %v73 = vld [vmem:[#allocation3 + $0x2c] sm:$0xf]
      %v74 = vld [vmem:[#allocation3 + $0x30] sm:$0xf]
      %v75 = vld [vmem:[#allocation3 + $0x34] sm:$0xf]
      %v76 = vld [vmem:[#allocation3 + $0x38] sm:$0xf]
      %v77 = vld [vmem:[#allocation3 + $0x3c] sm:$0xf]
      %v78 = vpack.c.bf16 %v58, %v58
      %v95 = vunpack.c.l.b16 %v62
      %v96 = vunpack.c.l.b16 %v63
      %v97 = vunpack.c.l.b16 %v64
      %v98 = vunpack.c.l.b16 %v65
      %v99 = vunpack.c.l.b16 %v66
      %v100 = vunpack.c.l.b16 %v67
      %v101 = vunpack.c.l.b16 %v68
      %v102 = vunpack.c.l.b16 %v69
      %v103 = vunpack.c.l.b16 %v70
      %v104 = vunpack.c.l.b16 %v71
      %v105 = vunpack.c.l.b16 %v72
      %v106 = vunpack.c.l.b16 %v73
      %v107 = vunpack.c.l.b16 %v74
      %v108 = vunpack.c.l.b16 %v75
      %v109 = vunpack.c.l.b16 %v76
      %v110 = vunpack.c.l.b16 %v77
      %v111 = vpack.c.b16 %v96, %v95
      %v112 = vpack.c.b16 %v98, %v97
      %v113 = vpack.c.b16 %v100, %v99
      %v114 = vpack.c.b16 %v102, %v101
      %v115 = vpack.c.b16 %v104, %v103
      %v116 = vpack.c.b16 %v106, %v105
      %v117 = vpack.c.b16 %v108, %v107
      %v118 = vpack.c.b16 %v110, %v109
      %127 = vmatpush.bf16.msra.mxu0 %v118
      %128 = vmatpush.bf16.msra.mxu0 %v117
      %129 = vmatpush.bf16.msra.mxu0 %v116
      %130 = vmatpush.bf16.msra.mxu0 %v115
      %131 = vmatpush.bf16.msra.mxu0 %v114
      %132 = vmatpush.bf16.msra.mxu0 %v113
      %133 = vmatpush.bf16.msra.mxu0 %v112
      %134 = vmatpush.bf16.msra.mxu0 %v111
      %135 = vmatmul.bf16.gmra.mxu0 %v78
      %v136 = vpop.f32.mrf.mxu0
      %v137 = vadd.f32 0.0, %v136
      %v138 = vpop.f32.mrf.mxu0
      %139 = vdwg.mxu0
      %v140 = vadd.f32 %v61, %v137
      %v141 = vtanh.pop %v140
      %v142 = vpack.c.bf16 %v141, %v141
      %143 = vmatpush.bf16.msra.mxu0 %v118
      %144 = vmatpush.bf16.msra.mxu0 %v117
      %145 = vmatpush.bf16.msra.mxu0 %v116
      %146 = vmatpush.bf16.msra.mxu0 %v115
      %147 = vmatpush.bf16.msra.mxu0 %v114
      %148 = vmatpush.bf16.msra.mxu0 %v113
      %149 = vmatpush.bf16.msra.mxu0 %v112
      %150 = vmatpush.bf16.msra.mxu0 %v111
      %151 = vmatmul.bf16.gmra.mxu0 %v142
      %v152 = vpop.f32.mrf.mxu0
      %v153 = vadd.f32 0.0, %v152
      %v154 = vpop.f32.mrf.mxu0
      %155 = vdwg.mxu0
      %v157 = vrot.slane %v153, 7
      %v159 = vadd.f32 %v61, %v157
      %v160 = vtanh.pop %v159
      %v161 = vpack.c.bf16 %v160, %v160
      %v163 = vshrl.u32 %v161, 16
      %166 = vmatpush.bf16.msra.mxu0 %v118
      %167 = vmatpush.bf16.msra.mxu0 %v117
      %168 = vmatpush.bf16.msra.mxu0 %v116
      %169 = vmatpush.bf16.msra.mxu0 %v115
      %170 = vmatpush.bf16.msra.mxu0 %v114
      %171 = vmatpush.bf16.msra.mxu0 %v113
      %172 = vmatpush.bf16.msra.mxu0 %v112
      %173 = vmatpush.bf16.msra.mxu0 %v111
      %174 = vmatmul.bf16.gmra.mxu0 %v163
      %v175 = vpop.f32.mrf.mxu0
      %v176 = vadd.f32 0.0, %v175
      %v177 = vpop.f32.mrf.mxu0
      %178 = vdwg.mxu0
      %v180 = vrot.slane %v176, 6
      %v182 = vadd.f32 %v61, %v180
      %v183 = vtanh.pop %v182
      %v184 = vpack.c.bf16 %v183, %v183
      %v186 = vrot.slane %v184, 1
      %188 = vmatpush.bf16.msra.mxu0 %v118
      %189 = vmatpush.bf16.msra.mxu0 %v117
      %190 = vmatpush.bf16.msra.mxu0 %v116
      %191 = vmatpush.bf16.msra.mxu0 %v115
      %192 = vmatpush.bf16.msra.mxu0 %v114
      %193 = vmatpush.bf16.msra.mxu0 %v113
      %194 = vmatpush.bf16.msra.mxu0 %v112
      %195 = vmatpush.bf16.msra.mxu0 %v111
      %196 = vmatmul.bf16.gmra.mxu0 %v186
      %v197 = vpop.f32.mrf.mxu0
      %v198 = vadd.f32 0.0, %v197
      %v199 = vpop.f32.mrf.mxu0
      %200 = vdwg.mxu0
      %v202 = vrot.slane %v198, 5
      %v204 = vadd.f32 %v61, %v202
      %v205 = vtanh.pop %v204
      %v206 = vpack.c.bf16 %v205, %v205
      %v208 = vshrl.u32 %v206, 16
      %v210 = vrot.slane %v208, 1
      %212 = vmatpush.bf16.msra.mxu0 %v118
      %213 = vmatpush.bf16.msra.mxu0 %v117
      %214 = vmatpush.bf16.msra.mxu0 %v116
      %215 = vmatpush.bf16.msra.mxu0 %v115
      %216 = vmatpush.bf16.msra.mxu0 %v114
      %217 = vmatpush.bf16.msra.mxu0 %v113
      %218 = vmatpush.bf16.msra.mxu0 %v112
      %219 = vmatpush.bf16.msra.mxu0 %v111
      %220 = vmatmul.bf16.gmra.mxu0 %v210
      %v221 = vpop.f32.mrf.mxu0
      %v222 = vadd.f32 0.0, %v221
      %v223 = vpop.f32.mrf.mxu0
      %224 = vdwg.mxu0
      %v226 = vrot.slane %v222, 4
      %v228 = vadd.f32 %v61, %v226
      %v229 = vtanh.pop %v228
      %v230 = vpack.c.bf16 %v229, %v229
      %v232 = vrot.slane %v230, 2
      %234 = vmatpush.bf16.msra.mxu0 %v118
      %235 = vmatpush.bf16.msra.mxu0 %v117
      %236 = vmatpush.bf16.msra.mxu0 %v116
      %237 = vmatpush.bf16.msra.mxu0 %v115
      %238 = vmatpush.bf16.msra.mxu0 %v114
      %239 = vmatpush.bf16.msra.mxu0 %v113
      %240 = vmatpush.bf16.msra.mxu0 %v112
      %241 = vmatpush.bf16.msra.mxu0 %v111
      %242 = vmatmul.bf16.gmra.mxu0 %v232
      %v243 = vpop.f32.mrf.mxu0
      %v244 = vadd.f32 0.0, %v243
      %v245 = vpop.f32.mrf.mxu0
      %246 = vdwg.mxu0
      %v248 = vrot.slane %v244, 3
      %v250 = vadd.f32 %v61, %v248
      %v251 = vtanh.pop %v250
      %v252 = vpack.c.bf16 %v251, %v251
      %v254 = vshrl.u32 %v252, 16
      %v256 = vrot.slane %v254, 2
      %258 = vmatpush.bf16.msra.mxu0 %v118
      %259 = vmatpush.bf16.msra.mxu0 %v117
      %260 = vmatpush.bf16.msra.mxu0 %v116
      %261 = vmatpush.bf16.msra.mxu0 %v115
      %262 = vmatpush.bf16.msra.mxu0 %v114
      %263 = vmatpush.bf16.msra.mxu0 %v113
      %264 = vmatpush.bf16.msra.mxu0 %v112
      %265 = vmatpush.bf16.msra.mxu0 %v111
      %266 = vmatmul.bf16.gmra.mxu0 %v256
      %v267 = vpop.f32.mrf.mxu0
      %v268 = vadd.f32 0.0, %v267
      %v269 = vpop.f32.mrf.mxu0
      %270 = vdwg.mxu0
      %v272 = vrot.slane %v268, 2
      %v274 = vadd.f32 %v61, %v272
      %v275 = vtanh.pop %v274
      %v276 = vpack.c.bf16 %v275, %v275
      %v278 = vrot.slane %v276, 3
      %280 = vmatpush.bf16.msra.mxu0 %v118
      %281 = vmatpush.bf16.msra.mxu0 %v117
      %282 = vmatpush.bf16.msra.mxu0 %v116
      %283 = vmatpush.bf16.msra.mxu0 %v115
      %284 = vmatpush.bf16.msra.mxu0 %v114
      %285 = vmatpush.bf16.msra.mxu0 %v113
      %286 = vmatpush.bf16.msra.mxu0 %v112
      %287 = vmatpush.bf16.msra.mxu0 %v111
      %288 = vmatmul.bf16.gmra.mxu0 %v278
      %v289 = vpop.f32.mrf.mxu0
      %v290 = vadd.f32 0.0, %v289
      %v291 = vpop.f32.mrf.mxu0
      %292 = vdwg.mxu0
      %v294 = vrot.slane %v290, 1
      %v296 = vadd.f32 %v61, %v294
      %v297 = vtanh.pop %v296
      %vm298 = vcmask 1040384
      %v299 = vsel %vm298, %v141, %v160
      %vm300 = vcmask 1041408
      %v301 = vsel %vm300, %v299, %v183
      %vm302 = vcmask 1042432
      %v303 = vsel %vm302, %v301, %v205
      %vm304 = vcmask 1043456
      %v305 = vsel %vm304, %v303, %v229
      %vm306 = vcmask 1044480
      %v307 = vsel %vm306, %v305, %v251
      %vm308 = vcmask 1045504
      %v309 = vsel %vm308, %v307, %v275
      %vm310 = vcmask 1046528
      %v311 = vsel %vm310, %v309, %v297
      %s312 = scalar_lea.vmem [#allocation5], %s59
      %313 = vst [vmem:[%s312] sm:$0xff] %v311
      %v315 = vrot.slane %v297, 7
    $region33: #{group_of_esn_cell_forward.1} parent=1 // loop_footer
      %s57 = sadd.s32 1, %s53
    $region34: #{group_of_esn_cell_forward.1} parent=1 // loop_footer_branch
      %52 = sbr.rel target = $region30
    $region35: #{group_of_esn_cell_forward.1} parent=1 // loop_exit
      _
    %317 = vst [vmem:[#allocation2] sm:$0x1] %v58
    // Predicated region
    $region36: #{group_of_esn_cell_forward.1} parent=1 // pred_check
      _
    $region37: #{group_of_esn_cell_forward.1} parent=1 // pred_check_branch
      %319 = sbr.rel (0) target = $region39
    $region38: #{group_of_esn_cell_forward.1} parent=1 // pred_region
      %321 = vsyncadd [#allocation6], 0
      %s322 = sshll.u32 [#allocation5], 4
      %s323 = int_to_ptr.vmem [resolvable:$true] %s322
      %s324 = sshll.u32 %s2, 4
      %s325 = int_to_ptr.hbm [resolvable:$true] %s324
      %330 = dma.vmem_to_hbm [thread:$0]  %s323, 384, %s325, [#allocation6], 128, 128, 8
    $region39: #{group_of_esn_cell_forward.1} parent=1 // pred_fallthru
      _
    // Predicated region
    $region40: #{group_of_esn_cell_forward.1} parent=1 // pred_check
      _
    $region41: #{group_of_esn_cell_forward.1} parent=1 // pred_check_branch
      %332 = sbr.rel (0) target = $region43
    $region42: #{group_of_esn_cell_forward.1} parent=1 // pred_region
      %334 = dma.done [#allocation6], 384
    $region43: #{group_of_esn_cell_forward.1} parent=1 // pred_fallthru
      _
    %335 = vsyncpa [#allocation6], 1
  %336 = vsyncmov [#allocation4]
  %s337 = vpop.sfrf %336
  %p338 = scmp.eq.s32.totalorder %s337, 0
  %p339 = pneg %p338
  %341 = shalt.err (%p339)

</llo_original>
